<compile_context>
chip_gen: v5e
topology: v5e:2x2
jax: 0.10.0
libtpu: 0.0.40
codegen_flags: <defaults>
</compile_context>

<pallas_src>
import jax
import jax.numpy as jnp
from jax.experimental import pallas as pl
from jax.experimental.pallas import tpu as pltpu

NUM_OBSERVATIONS = 12   # FlappyBird non-lidar observation size
NUM_ACTIONS = 2         # flap / no-flap
HIDDEN = 512
OUT_PAD = 8             # lane-light output store; real logits in [:, :NUM_ACTIONS]
MAX_TILE_B = 512        # cap on the batch tile (MXU-friendly, small VMEM footprint)


def dqn_kernel(x_ref, w1_ref, b1_ref, w2_ref, b2_ref, w3_ref, b3_ref, out_ref):
    """Fused 3-layer MLP: relu(x@W1+b1) -> relu(.@W2+b2) -> .@W3+b3.

    Layer 1 (K=12) and layer 3 (N=8) are tiny, so they run in f32 (no padding,
    no packing edge cases); the dominant 512x512 layer 2 uses bf16 weights with
    f32 MXU accumulation. Bias-add / ReLU run in f32 on the VPU (safe on v5e).
    """
    x = x_ref[...]                                                   # (TILE_B, 12) f32

    h1 = jnp.dot(x, w1_ref[...], preferred_element_type=jnp.float32) + b1_ref[...]
    h1 = jnp.maximum(h1, 0.0)                                        # (TILE_B, 512) f32

    h2 = jnp.dot(h1.astype(jnp.bfloat16), w2_ref[...],
                 preferred_element_type=jnp.float32) + b2_ref[...]
    h2 = jnp.maximum(h2, 0.0)                                        # (TILE_B, 512) f32

    out_ref[...] = jnp.dot(h2, w3_ref[...],
                           preferred_element_type=jnp.float32) + b3_ref[...]


def _choose_tile_b(batch):
    """Batch-adaptive tile: small batches avoid padding waste; large batches
    get >= 2 tiles so the 'parallel' grid axis can shard across both v7x
    TensorCores. Tile is a multiple of 8 (f32 sublane tile), capped at 512."""
    half = (batch + 1) // 2
    tile = ((half + 7) // 8) * 8
    return max(8, min(MAX_TILE_B, tile))


def dqn_forward(x, params):
    """x: (B, NUM_OBSERVATIONS) f32 -> (B, NUM_ACTIONS) f32."""
    w1, b1, w2, b2, w3, b3 = params
    B = x.shape[0]
    tile_b = _choose_tile_b(B)
    n_tiles = pl.cdiv(B, tile_b)
    b_pad = n_tiles * tile_b
    if b_pad != B:
        x = jnp.pad(x, ((0, b_pad - B), (0, 0)))   # tiny: 48 B/row, only the tail tile

    flops = 2 * b_pad * (NUM_OBSERVATIONS * HIDDEN + HIDDEN * HIDDEN + HIDDEN * OUT_PAD)
    bytes_accessed = (
        b_pad * NUM_OBSERVATIONS * 4 + b_pad * OUT_PAD * 4
        + sum(int(a.size) * a.dtype.itemsize for a in (w1, b1, w2, b2, w3, b3)))

    const = lambda i: (0, 0)   # weights/biases resident: same block every grid step
    out = pl.pallas_call(
        dqn_kernel,
        out_shape=jax.ShapeDtypeStruct((b_pad, OUT_PAD), jnp.float32),
        grid=(n_tiles,),
        in_specs=[
            pl.BlockSpec((tile_b, NUM_OBSERVATIONS), lambda i: (i, 0)),  # x streamed
            pl.BlockSpec((NUM_OBSERVATIONS, HIDDEN), const),             # W1 (12, 512) f32
            pl.BlockSpec((1, HIDDEN), const),                            # b1
            pl.BlockSpec((HIDDEN, HIDDEN), const),                       # W2 (512, 512) bf16
            pl.BlockSpec((1, HIDDEN), const),                            # b2
            pl.BlockSpec((HIDDEN, OUT_PAD), const),                      # W3 (512, 8) f32
            pl.BlockSpec((1, OUT_PAD), const),                           # b3
        ],
        out_specs=pl.BlockSpec((tile_b, OUT_PAD), lambda i: (i, 0)),
        compiler_params=pltpu.CompilerParams(
            dimension_semantics=("parallel",)),
        cost_estimate=pl.CostEstimate(
            flops=flops, transcendentals=0, bytes_accessed=bytes_accessed),
    )(x, w1, b1, w2, b2, w3, b3)

    return out[:B, :NUM_ACTIONS]


def init_params(key):
    """PyTorch Linear default init U(-1/sqrt(fan_in), +1/sqrt(fan_in)).

    Weights stored (in, out) — transposed vs torch's (out, in) — so the kernel
    does x @ W. Only W3/b3 are lane-padded (2 -> 8); the pad columns are kept
    zero so out[:, :2] is exact (pad-on-load invariant).
    """
    ks = jax.random.split(key, 6)

    def uniform(k, shape, fan_in):
        bound = 1.0 / jnp.sqrt(fan_in)
        return jax.random.uniform(k, shape, jnp.float32, -bound, bound)

    w1 = uniform(ks[0], (NUM_OBSERVATIONS, HIDDEN), NUM_OBSERVATIONS)          # f32, 24 KiB
    b1 = uniform(ks[1], (1, HIDDEN), NUM_OBSERVATIONS)

    w2 = uniform(ks[2], (HIDDEN, HIDDEN), HIDDEN).astype(jnp.bfloat16)          # bf16, 512 KiB
    b2 = uniform(ks[3], (1, HIDDEN), HIDDEN)

    w3_real = uniform(ks[4], (HIDDEN, NUM_ACTIONS), HIDDEN)
    b3_real = uniform(ks[5], (1, NUM_ACTIONS), HIDDEN)
    w3 = jnp.zeros((HIDDEN, OUT_PAD), jnp.float32).at[:, :NUM_ACTIONS].set(w3_real)
    b3 = jnp.zeros((1, OUT_PAD), jnp.float32).at[:, :NUM_ACTIONS].set(b3_real)

    # TODO(synk): optional fp8 (e4m3) W2 path gated on v7x via pltpu.get_tpu_info
    # (v5e/v6e MXUs take int8/int4, not fp8) for small-batch latency.
    return (w1, b1, w2, b2, w3, b3)


def dqn_ref(x, params):
    """Pure-JAX reference with identical dtype handling to the kernel."""
    w1, b1, w2, b2, w3, b3 = params
    h1 = jnp.maximum(jnp.dot(x, w1, preferred_element_type=jnp.float32) + b1, 0.0)
    h2 = jnp.maximum(jnp.dot(h1.astype(jnp.bfloat16), w2,
                             preferred_element_type=jnp.float32) + b2, 0.0)
    out = jnp.dot(h2, w3, preferred_element_type=jnp.float32) + b3
    return out[:, :NUM_ACTIONS]


if __name__ == "__main__":
    key = jax.random.PRNGKey(0)
    k_params, k_x1, k_x2 = jax.random.split(key, 3)

    params = init_params(k_params)

    # Single-env-style inference batch (pads only to one 8-row tile now).
    batch = 2
    x = jax.random.normal(k_x1, (batch, NUM_OBSERVATIONS), jnp.float32)
    out = jax.block_until_ready(dqn_forward(x, params))
    ref = dqn_ref(x, params)
    assert out.shape == (batch, NUM_ACTIONS), out.shape
    assert jnp.allclose(out, ref, atol=1e-2, rtol=1e-2), (out, ref)

    # Multi-tile path (grid > 1, ragged batch) sanity check.
    batch2 = 33
    x2 = jax.random.normal(k_x2, (batch2, NUM_OBSERVATIONS), jnp.float32)
    out2 = jax.block_until_ready(dqn_forward(x2, params))
    ref2 = dqn_ref(x2, params)
    assert out2.shape == (batch2, NUM_ACTIONS), out2.shape
    assert jnp.allclose(out2, ref2, atol=1e-2, rtol=1e-2), (out2, ref2)

    print("KERNEL_OK")
</pallas_src>

<mosaic_0001>
module attributes {stable_mosaic.version = 11 : i64} {
  func.func @dqn_kernel(%arg0: i32, %arg1: memref<8x12xf32, #tpu.memory_space<vmem>>, %arg2: memref<12x512xf32, #tpu.memory_space<vmem>>, %arg3: memref<1x512xf32, #tpu.memory_space<vmem>>, %arg4: memref<512x512xbf16, #tpu.memory_space<vmem>>, %arg5: memref<1x512xf32, #tpu.memory_space<vmem>>, %arg6: memref<512x8xf32, #tpu.memory_space<vmem>>, %arg7: memref<1x8xf32, #tpu.memory_space<vmem>>, %arg8: memref<8x8xf32, #tpu.memory_space<vmem>>) attributes {dimension_semantics = [#tpu.dimension_semantics<parallel>], iteration_bounds = array<i64: 1>, scalar_prefetch = 0 : i64, scratch_operands = 0 : i64, tpu.core_type = #tpu.core_type<tc>, window_params = [{transform_indices = @transform_0, window_bounds = array<i64: 8, 12>}, {pipeline_mode = #tpu.pipeline_mode<synchronous>, transform_indices = @transform_1, window_bounds = array<i64: 12, 512>}, {pipeline_mode = #tpu.pipeline_mode<synchronous>, transform_indices = @transform_2, window_bounds = array<i64: 1, 512>}, {pipeline_mode = #tpu.pipeline_mode<synchronous>, transform_indices = @transform_3, window_bounds = array<i64: 512, 512>}, {pipeline_mode = #tpu.pipeline_mode<synchronous>, transform_indices = @transform_4, window_bounds = array<i64: 1, 512>}, {pipeline_mode = #tpu.pipeline_mode<synchronous>, transform_indices = @transform_5, window_bounds = array<i64: 512, 8>}, {pipeline_mode = #tpu.pipeline_mode<synchronous>, transform_indices = @transform_6, window_bounds = array<i64: 1, 8>}, {transform_indices = @transform_7, window_bounds = array<i64: 8, 8>}]} {
    %c0 = arith.constant 0 : index
    %c0_0 = arith.constant 0 : index
    %0 = vector.load %arg1[%c0, %c0_0] : memref<8x12xf32, #tpu.memory_space<vmem>>, vector<8x12xf32>
    %c0_1 = arith.constant 0 : index
    %c0_2 = arith.constant 0 : index
    %1 = vector.load %arg2[%c0_1, %c0_2] : memref<12x512xf32, #tpu.memory_space<vmem>>, vector<12x512xf32>
    %cst = arith.constant dense<0.000000e+00> : vector<8x512xf32>
    %2 = tpu.matmul %0, %1, %cst {dimension_numbers = #tpu.dot_dimension_numbers<[1], [0], [0], [1], [0, 0, 1, 1], [], []>} : vector<8x12xf32>, vector<12x512xf32>, vector<8x512xf32> -> vector<8x512xf32>
    %c0_3 = arith.constant 0 : index
    %c0_4 = arith.constant 0 : index
    %3 = vector.load %arg3[%c0_3, %c0_4] : memref<1x512xf32, #tpu.memory_space<vmem>>, vector<1x512xf32>
    %4 = vector.broadcast %3 : vector<1x512xf32> to vector<8x512xf32>
    %5 = arith.addf %2, %4 : vector<8x512xf32>
    %cst_5 = arith.constant 0.000000e+00 : f32
    %6 = vector.broadcast %cst_5 : f32 to vector<8x512xf32>
    %7 = arith.maximumf %5, %6 : vector<8x512xf32>
    %8 = arith.truncf %7 : vector<8x512xf32> to vector<8x512xbf16>
    %c0_6 = arith.constant 0 : index
    %c0_7 = arith.constant 0 : index
    %9 = vector.load %arg4[%c0_6, %c0_7] : memref<512x512xbf16, #tpu.memory_space<vmem>>, vector<512x512xbf16>
    %cst_8 = arith.constant dense<0.000000e+00> : vector<8x512xf32>
    %10 = tpu.matmul %8, %9, %cst_8 {dimension_numbers = #tpu.dot_dimension_numbers<[1], [0], [0], [1], [0, 0, 1, 1], [], []>} : vector<8x512xbf16>, vector<512x512xbf16>, vector<8x512xf32> -> vector<8x512xf32>
    %c0_9 = arith.constant 0 : index
    %c0_10 = arith.constant 0 : index
    %11 = vector.load %arg5[%c0_9, %c0_10] : memref<1x512xf32, #tpu.memory_space<vmem>>, vector<1x512xf32>
    %12 = vector.broadcast %11 : vector<1x512xf32> to vector<8x512xf32>
    %13 = arith.addf %10, %12 : vector<8x512xf32>
    %cst_11 = arith.constant 0.000000e+00 : f32
    %14 = vector.broadcast %cst_11 : f32 to vector<8x512xf32>
    %15 = arith.maximumf %13, %14 : vector<8x512xf32>
    %c0_12 = arith.constant 0 : index
    %c0_13 = arith.constant 0 : index
    %16 = vector.load %arg6[%c0_12, %c0_13] : memref<512x8xf32, #tpu.memory_space<vmem>>, vector<512x8xf32>
    %cst_14 = arith.constant dense<0.000000e+00> : vector<8x8xf32>
    %17 = tpu.matmul %15, %16, %cst_14 {dimension_numbers = #tpu.dot_dimension_numbers<[1], [0], [0], [1], [0, 0, 1, 1], [], []>} : vector<8x512xf32>, vector<512x8xf32>, vector<8x8xf32> -> vector<8x8xf32>
    %c0_15 = arith.constant 0 : index
    %c0_16 = arith.constant 0 : index
    %18 = vector.load %arg7[%c0_15, %c0_16] : memref<1x8xf32, #tpu.memory_space<vmem>>, vector<1x8xf32>
    %19 = vector.broadcast %18 : vector<1x8xf32> to vector<8x8xf32>
    %20 = arith.addf %17, %19 : vector<8x8xf32>
    %c0_17 = arith.constant 0 : index
    %c0_18 = arith.constant 0 : index
    %21 = vector.load %arg8[%c0_17, %c0_18] : memref<8x8xf32, #tpu.memory_space<vmem>>, vector<8x8xf32>
    tpu.vector_store %arg8[%c0_17, %c0_18], %20 {strides = array<i32>} : memref<8x8xf32, #tpu.memory_space<vmem>>, vector<8x8xf32>,
    return
  }
  func.func @transform_0(%arg0: i32) -> (i32, i32) {
    %c0_i32 = arith.constant 0 : i32
    %c0_i32_0 = arith.constant 0 : i32
    return %arg0, %c0_i32 : i32, i32
  }
  func.func @transform_1(%arg0: i32) -> (i32, i32) {
    %c0_i32 = arith.constant 0 : i32
    %c0_i32_0 = arith.constant 0 : i32
    %c0_i32_1 = arith.constant 0 : i32
    return %c0_i32, %c0_i32_0 : i32, i32
  }
  func.func @transform_2(%arg0: i32) -> (i32, i32) {
    %c0_i32 = arith.constant 0 : i32
    %c0_i32_0 = arith.constant 0 : i32
    %c0_i32_1 = arith.constant 0 : i32
    return %c0_i32, %c0_i32_0 : i32, i32
  }
  func.func @transform_3(%arg0: i32) -> (i32, i32) {
    %c0_i32 = arith.constant 0 : i32
    %c0_i32_0 = arith.constant 0 : i32
    %c0_i32_1 = arith.constant 0 : i32
    return %c0_i32, %c0_i32_0 : i32, i32
  }
  func.func @transform_4(%arg0: i32) -> (i32, i32) {
    %c0_i32 = arith.constant 0 : i32
    %c0_i32_0 = arith.constant 0 : i32
    %c0_i32_1 = arith.constant 0 : i32
    return %c0_i32, %c0_i32_0 : i32, i32
  }
  func.func @transform_5(%arg0: i32) -> (i32, i32) {
    %c0_i32 = arith.constant 0 : i32
    %c0_i32_0 = arith.constant 0 : i32
    %c0_i32_1 = arith.constant 0 : i32
    return %c0_i32, %c0_i32_0 : i32, i32
  }
  func.func @transform_6(%arg0: i32) -> (i32, i32) {
    %c0_i32 = arith.constant 0 : i32
    %c0_i32_0 = arith.constant 0 : i32
    %c0_i32_1 = arith.constant 0 : i32
    return %c0_i32, %c0_i32_0 : i32, i32
  }
  func.func @transform_7(%arg0: i32) -> (i32, i32) {
    %c0_i32 = arith.constant 0 : i32
    %c0_i32_0 = arith.constant 0 : i32
    return %arg0, %c0_i32 : i32, i32
  }
}

</mosaic_0001>

<llo_original>
// kernel: tpu_custom_call.1
$region0: #{tpu_custom_call.1}
  #allocation0 [shape = 'u32[]', space=smem, size = 0x4, offset = 0x4, fixed_abs, tag = 'smem constant byte address 0x4 - core index']
  #allocation1 [shape = 'u32[72,128]{1,0:T(1,128)}', space=vmem, size = 0x9000, scoped, tag = 'internal scratch']
  %s0 = inlined_call_operand.vmem [shape: f32[8,12], index: 0, kind: input, shape index: {}]
  %s1 = inlined_call_operand.vmem [shape: f32[12,512], index: 1, kind: input, shape index: {}]
  %s2 = inlined_call_operand.vmem [shape: f32[1,512], index: 2, kind: input, shape index: {}]
  %s3 = inlined_call_operand.hbm [shape: bf16[512,512], index: 3, kind: input, shape index: {}]
  %s4 = inlined_call_operand.vmem [shape: f32[1,512], index: 4, kind: input, shape index: {}]
  %s5 = inlined_call_operand.vmem [shape: f32[512,8], index: 5, kind: input, shape index: {}]
  %s6 = inlined_call_operand.vmem [shape: f32[1,8], index: 6, kind: input, shape index: {}]
  %s7 = inlined_call_operand.hbm [shape: f32[8,8], index: 7, kind: output, shape index: {}]
  %s8 = sld [smem:[#allocation0]]
  $region42: #{tpu_custom_call.1} parent=0
    _
  %s10 = ssub.s32 1, %s8
  %s11 = scalar_select 0, %s10, %s8
  $region1: #{tpu_custom_call.1} parent=0
    #allocation2 [shape = 'u8[524288]{0}', space=vmem, size = 0x80000, scoped, tag = 'input window, operand 3, single buffered']
    #allocation3 [shape = 's32[1]{0}', space=sflag, size = 0x4, scoped, tag = 'scoped memory for tpu_custom_call.1']
    #allocation4 [shape = 's32[1]{0}', space=sflag, size = 0x4, scoped, tag = 'scoped memory for tpu_custom_call.1']
    #allocation5 [shape = 'u8[4096]{0}', space=vmem, size = 0x1000, scoped, tag = 'output window, operand 0, single buffered']
    %12 = vsyncpa [#allocation3], 0
    %13 = vsyncpa [#allocation4], 0
    // Predicated region
    $region2: #{tpu_custom_call.1} parent=1 // pred_check
      _
    $region3: #{tpu_custom_call.1} parent=1 // pred_check_branch
      %15 = sbr.rel (0) target = $region5
    $region4: #{tpu_custom_call.1} parent=1 // pred_region
      _
    $region5: #{tpu_custom_call.1} parent=1 // pred_fallthru
      _
    // Predicated region
    $region6: #{tpu_custom_call.1} parent=1 // pred_check
      _
    $region7: #{tpu_custom_call.1} parent=1 // pred_check_branch
      %17 = sbr.rel (0) target = $region9
    $region8: #{tpu_custom_call.1} parent=1 // pred_region
      _
    $region9: #{tpu_custom_call.1} parent=1 // pred_fallthru
      _
    // Predicated region
    $region10: #{tpu_custom_call.1} parent=1 // pred_check
      _
    $region11: #{tpu_custom_call.1} parent=1 // pred_check_branch
      %19 = sbr.rel (0) target = $region13
    $region12: #{tpu_custom_call.1} parent=1 // pred_region
      _
    $region13: #{tpu_custom_call.1} parent=1 // pred_fallthru
      _
    // Predicated region
    $region14: #{tpu_custom_call.1} parent=1 // pred_check
      _
    $region15: #{tpu_custom_call.1} parent=1 // pred_check_branch
      %21 = sbr.rel (0) target = $region17
    $region16: #{tpu_custom_call.1} parent=1 // pred_region
      %23 = vsyncadd [#allocation3], 0
      %s24 = sshll.u32 %s3, 4
      %s25 = int_to_ptr.hbm [resolvable:$true] %s24
      %s26 = sshll.u32 [#allocation2], 4
      %s27 = int_to_ptr.vmem [resolvable:$true] %s26
      %32 = dma.hbm_to_vmem [thread:$0]  %s25, 16384, %s27, [#allocation3], 256, 256, 16
    $region17: #{tpu_custom_call.1} parent=1 // pred_fallthru
      _
    // Predicated region
    $region18: #{tpu_custom_call.1} parent=1 // pred_check
      _
    $region19: #{tpu_custom_call.1} parent=1 // pred_check_branch
      %34 = sbr.rel (0) target = $region21
    $region20: #{tpu_custom_call.1} parent=1 // pred_region
      _
    $region21: #{tpu_custom_call.1} parent=1 // pred_fallthru
      _
    // Predicated region
    $region22: #{tpu_custom_call.1} parent=1 // pred_check
      _
    $region23: #{tpu_custom_call.1} parent=1 // pred_check_branch
      %36 = sbr.rel (0) target = $region25
    $region24: #{tpu_custom_call.1} parent=1 // pred_region
      _
    $region25: #{tpu_custom_call.1} parent=1 // pred_fallthru
      _
    // Predicated region
    $region26: #{tpu_custom_call.1} parent=1 // pred_check
      _
    $region27: #{tpu_custom_call.1} parent=1 // pred_check_branch
      %38 = sbr.rel (0) target = $region29
    $region28: #{tpu_custom_call.1} parent=1 // pred_region
      _
    $region29: #{tpu_custom_call.1} parent=1 // pred_fallthru
      _
    // Predicated region
    $region30: #{tpu_custom_call.1} parent=1 // pred_check
      _
    $region31: #{tpu_custom_call.1} parent=1 // pred_check_branch
      %40 = sbr.rel (0) target = $region33
    $region32: #{tpu_custom_call.1} parent=1 // pred_region
      %42 = dma.done [#allocation3], 16384
    $region33: #{tpu_custom_call.1} parent=1 // pred_fallthru
      _
    %v43 = vld [vmem:[%s0] sm:$0xff]
    %v44 = vld [vmem:[%s1] sm:$0xff]
    %v45 = vld [vmem:[%s1 + $0x8] sm:$0xff]
    %v46 = vld [vmem:[%s1 + $0x10] sm:$0xff]
    %v47 = vld [vmem:[%s1 + $0x18] sm:$0xff]
    %v48 = vld [vmem:[%s1 + $0x20] sm:$0xf]
    %v49 = vld [vmem:[%s1 + $0x28] sm:$0xf]
    %v50 = vld [vmem:[%s1 + $0x30] sm:$0xf]
    %v51 = vld [vmem:[%s1 + $0x38] sm:$0xf]
    %v52 = vld [vmem:[%s2] sm:$0xf]
    %v54 = vperm.slane %v52, 0
    %v55 = vperm.slane %v52, 1
    %v56 = vperm.slane %v52, 2
    %v57 = vperm.slane %v52, 3
    %vm62 = vcmask 97280
    %v64 = vsel %vm62, %v43, 0
    %vm66 = vcmask 1043456
    %v68 = vsel %vm66, %v48, 0
    %v71 = vsel %vm66, %v49, 0
    %v74 = vsel %vm66, %v50, 0
    %v77 = vsel %vm66, %v51, 0
    %79 = vmatpush.msra.mxu0 0.0
    %80 = vmatpush.msra.mxu0 0.0
    %81 = vmatpush.msra.mxu0 0.0
    %82 = vmatpush.msra.mxu0 0.0
    %83 = vmatpush.msra.mxu0 0.0
    %84 = vmatpush.msra.mxu0 0.0
    %85 = vmatpush.msra.mxu0 0.0
    %86 = vmatpush.msra.mxu0 0.0
    %87 = vmatpush.msra.mxu0 0.0
    %88 = vmatpush.msra.mxu0 0.0
    %89 = vmatpush.msra.mxu0 0.0
    %90 = vmatpush.msra.mxu0 0.0
    %91 = vmatpush.msra.mxu0 0.0
    %92 = vmatpush.msra.mxu0 0.0
    %93 = vmatpush.msra.mxu0 %v68
    %94 = vmatpush.msra.mxu0 %v44
    %95 = vmatmul.f32.gmra.mxu0 %v64
    %v96 = vpop.f32.mrf.mxu0
    %v97 = vadd.f32 %v54, %v96
    %98 = vdwg.mxu0
    %99 = vmatpush.msra.mxu0 0.0
    %100 = vmatpush.msra.mxu0 0.0
    %101 = vmatpush.msra.mxu0 0.0
    %102 = vmatpush.msra.mxu0 0.0
    %103 = vmatpush.msra.mxu0 0.0
    %104 = vmatpush.msra.mxu0 0.0
    %105 = vmatpush.msra.mxu0 0.0
    %106 = vmatpush.msra.mxu0 0.0
    %107 = vmatpush.msra.mxu0 0.0
    %108 = vmatpush.msra.mxu0 0.0
    %109 = vmatpush.msra.mxu0 0.0
    %110 = vmatpush.msra.mxu0 0.0
    %111 = vmatpush.msra.mxu0 0.0
    %112 = vmatpush.msra.mxu0 0.0
    %113 = vmatpush.msra.mxu0 %v71
    %114 = vmatpush.msra.mxu0 %v45
    %115 = vmatmul.f32.gmra.mxu0 %v64
    %v116 = vpop.f32.mrf.mxu0
    %v117 = vadd.f32 %v55, %v116
    %118 = vdwg.mxu0
    %119 = vmatpush.msra.mxu0 0.0
    %120 = vmatpush.msra.mxu0 0.0
    %121 = vmatpush.msra.mxu0 0.0
    %122 = vmatpush.msra.mxu0 0.0
    %123 = vmatpush.msra.mxu0 0.0
    %124 = vmatpush.msra.mxu0 0.0
    %125 = vmatpush.msra.mxu0 0.0
    %126 = vmatpush.msra.mxu0 0.0
    %127 = vmatpush.msra.mxu0 0.0
    %128 = vmatpush.msra.mxu0 0.0
    %129 = vmatpush.msra.mxu0 0.0
    %130 = vmatpush.msra.mxu0 0.0
    %131 = vmatpush.msra.mxu0 0.0
    %132 = vmatpush.msra.mxu0 0.0
    %133 = vmatpush.msra.mxu0 %v74
    %134 = vmatpush.msra.mxu0 %v46
    %135 = vmatmul.f32.gmra.mxu0 %v64
    %v136 = vpop.f32.mrf.mxu0
    %v137 = vadd.f32 %v56, %v136
    %138 = vdwg.mxu0
    %139 = vmatpush.msra.mxu0 0.0
    %140 = vmatpush.msra.mxu0 0.0
    %141 = vmatpush.msra.mxu0 0.0
    %142 = vmatpush.msra.mxu0 0.0
    %143 = vmatpush.msra.mxu0 0.0
    %144 = vmatpush.msra.mxu0 0.0
    %145 = vmatpush.msra.mxu0 0.0
    %146 = vmatpush.msra.mxu0 0.0
    %147 = vmatpush.msra.mxu0 0.0
    %148 = vmatpush.msra.mxu0 0.0
    %149 = vmatpush.msra.mxu0 0.0
    %150 = vmatpush.msra.mxu0 0.0
    %151 = vmatpush.msra.mxu0 0.0
    %152 = vmatpush.msra.mxu0 0.0
    %153 = vmatpush.msra.mxu0 %v77
    %154 = vmatpush.msra.mxu0 %v47
    %155 = vmatmul.f32.gmra.mxu0 %v64
    %v156 = vpop.f32.mrf.mxu0
    %v157 = vadd.f32 %v57, %v156
    %158 = vdwg.mxu0
    %v159 = vmax.f32 %v97, 0.0
    %v160 = vmax.f32 %v117, 0.0
    %v161 = vmax.f32 %v137, 0.0
    %v162 = vmax.f32 %v157, 0.0
    %v163 = vpack.c.bf16 %v159, %v159
    %v164 = vpack.c.bf16 %v160, %v160
    %v165 = vpack.c.bf16 %v161, %v161
    %v166 = vpack.c.bf16 %v162, %v162
    %v167 = vld [vmem:[#allocation2] sm:$0xff]
    %v168 = vld [vmem:[#allocation2 + $0x8] sm:$0xff]
    %v169 = vld [vmem:[#allocation2 + $0x10] sm:$0xff]
    %v170 = vld [vmem:[#allocation2 + $0x18] sm:$0xff]
    %v171 = vld [vmem:[#allocation2 + $0x20] sm:$0xff]
    %v172 = vld [vmem:[#allocation2 + $0x28] sm:$0xff]
    %v173 = vld [vmem:[#allocation2 + $0x30] sm:$0xff]
    %v174 = vld [vmem:[#allocation2 + $0x38] sm:$0xff]
    %v175 = vld [vmem:[#allocation2 + $0x40] sm:$0xff]
    %v176 = vld [vmem:[#allocation2 + $0x48] sm:$0xff]
    %v177 = vld [vmem:[#allocation2 + $0x50] sm:$0xff]
    %v178 = vld [vmem:[#allocation2 + $0x58] sm:$0xff]
    %v179 = vld [vmem:[#allocation2 + $0x60] sm:$0xff]
    %v180 = vld [vmem:[#allocation2 + $0x68] sm:$0xff]
    %v181 = vld [vmem:[#allocation2 + $0x70] sm:$0xff]
    %v182 = vld [vmem:[#allocation2 + $0x78] sm:$0xff]
    %v183 = vld [vmem:[#allocation2 + $0x80] sm:$0xff]
    %v184 = vld [vmem:[#allocation2 + $0x88] sm:$0xff]
    %v185 = vld [vmem:[#allocation2 + $0x90] sm:$0xff]
    %v186 = vld [vmem:[#allocation2 + $0x98] sm:$0xff]
    %v187 = vld [vmem:[#allocation2 + $0xa0] sm:$0xff]
    %v188 = vld [vmem:[#allocation2 + $0xa8] sm:$0xff]
    %v189 = vld [vmem:[#allocation2 + $0xb0] sm:$0xff]
    %v190 = vld [vmem:[#allocation2 + $0xb8] sm:$0xff]
    %v191 = vld [vmem:[#allocation2 + $0xc0] sm:$0xff]
    %v192 = vld [vmem:[#allocation2 + $0xc8] sm:$0xff]
    %v193 = vld [vmem:[#allocation2 + $0xd0] sm:$0xff]
    %v194 = vld [vmem:[#allocation2 + $0xd8] sm:$0xff]
    %v195 = vld [vmem:[#allocation2 + $0xe0] sm:$0xff]
    %v196 = vld [vmem:[#allocation2 + $0xe8] sm:$0xff]
    %v197 = vld [vmem:[#allocation2 + $0xf0] sm:$0xff]
    %v198 = vld [vmem:[#allocation2 + $0xf8] sm:$0xff]
    %v199 = vld [vmem:[#allocation2 + $0x100] sm:$0xff]
    %v200 = vld [vmem:[#allocation2 + $0x108] sm:$0xff]
    %v201 = vld [vmem:[#allocation2 + $0x110] sm:$0xff]
    %v202 = vld [vmem:[#allocation2 + $0x118] sm:$0xff]
    %v203 = vld [vmem:[#allocation2 + $0x120] sm:$0xff]
    %v204 = vld [vmem:[#allocation2 + $0x128] sm:$0xff]
    %v205 = vld [vmem:[#allocation2 + $0x130] sm:$0xff]
    %v206 = vld [vmem:[#allocation2 + $0x138] sm:$0xff]
    %v207 = vld [vmem:[#allocation2 + $0x140] sm:$0xff]
    %v208 = vld [vmem:[#allocation2 + $0x148] sm:$0xff]
    %v209 = vld [vmem:[#allocation2 + $0x150] sm:$0xff]
    %v210 = vld [vmem:[#allocation2 + $0x158] sm:$0xff]
    %v211 = vld [vmem:[#allocation2 + $0x160] sm:$0xff]
    %v212 = vld [vmem:[#allocation2 + $0x168] sm:$0xff]
    %v213 = vld [vmem:[#allocation2 + $0x170] sm:$0xff]
    %v214 = vld [vmem:[#allocation2 + $0x178] sm:$0xff]
    %v215 = vld [vmem:[#allocation2 + $0x180] sm:$0xff]
    %v216 = vld [vmem:[#allocation2 + $0x188] sm:$0xff]
    %v217 = vld [vmem:[#allocation2 + $0x190] sm:$0xff]
    %v218 = vld [vmem:[#allocation2 + $0x198] sm:$0xff]
    %v219 = vld [vmem:[#allocation2 + $0x1a0] sm:$0xff]
    %v220 = vld [vmem:[#allocation2 + $0x1a8] sm:$0xff]
    %v221 = vld [vmem:[#allocation2 + $0x1b0] sm:$0xff]
    %v222 = vld [vmem:[#allocation2 + $0x1b8] sm:$0xff]
    %v223 = vld [vmem:[#allocation2 + $0x1c0] sm:$0xff]
    %v224 = vld [vmem:[#allocation2 + $0x1c8] sm:$0xff]
    %v225 = vld [vmem:[#allocation2 + $0x1d0] sm:$0xff]
    %v226 = vld [vmem:[#allocation2 + $0x1d8] sm:$0xff]
    %v227 = vld [vmem:[#allocation2 + $0x1e0] sm:$0xff]
    %v228 = vld [vmem:[#allocation2 + $0x1e8] sm:$0xff]
    %v229 = vld [vmem:[#allocation2 + $0x1f0] sm:$0xff]
    %v230 = vld [vmem:[#allocation2 + $0x1f8] sm:$0xff]
    %v231 = vld [vmem:[#allocation2 + $0x200] sm:$0xff]
    %v232 = vld [vmem:[#allocation2 + $0x208] sm:$0xff]
    %v233 = vld [vmem:[#allocation2 + $0x210] sm:$0xff]
    %v234 = vld [vmem:[#allocation2 + $0x218] sm:$0xff]
    %v235 = vld [vmem:[#allocation2 + $0x220] sm:$0xff]
    %v236 = vld [vmem:[#allocation2 + $0x228] sm:$0xff]
    %v237 = vld [vmem:[#allocation2 + $0x230] sm:$0xff]
    %v238 = vld [vmem:[#allocation2 + $0x238] sm:$0xff]
    %v239 = vld [vmem:[#allocation2 + $0x240] sm:$0xff]
    %v240 = vld [vmem:[#allocation2 + $0x248] sm:$0xff]
    %v241 = vld [vmem:[#allocation2 + $0x250] sm:$0xff]
    %v242 = vld [vmem:[#allocation2 + $0x258] sm:$0xff]
    %v243 = vld [vmem:[#allocation2 + $0x260] sm:$0xff]
    %v244 = vld [vmem:[#allocation2 + $0x268] sm:$0xff]
    %v245 = vld [vmem:[#allocation2 + $0x270] sm:$0xff]
    %v246 = vld [vmem:[#allocation2 + $0x278] sm:$0xff]
    %v247 = vld [vmem:[#allocation2 + $0x280] sm:$0xff]
    %v248 = vld [vmem:[#allocation2 + $0x288] sm:$0xff]
    %v249 = vld [vmem:[#allocation2 + $0x290] sm:$0xff]
    %v250 = vld [vmem:[#allocation2 + $0x298] sm:$0xff]
    %v251 = vld [vmem:[#allocation2 + $0x2a0] sm:$0xff]
    %v252 = vld [vmem:[#allocation2 + $0x2a8] sm:$0xff]
    %v253 = vld [vmem:[#allocation2 + $0x2b0] sm:$0xff]
    %v254 = vld [vmem:[#allocation2 + $0x2b8] sm:$0xff]
    %v255 = vld [vmem:[#allocation2 + $0x2c0] sm:$0xff]
    %v256 = vld [vmem:[#allocation2 + $0x2c8] sm:$0xff]
    %v257 = vld [vmem:[#allocation2 + $0x2d0] sm:$0xff]
    %v258 = vld [vmem:[#allocation2 + $0x2d8] sm:$0xff]
    %v259 = vld [vmem:[#allocation2 + $0x2e0] sm:$0xff]
    %v260 = vld [vmem:[#allocation2 + $0x2e8] sm:$0xff]
    %v261 = vld [vmem:[#allocation2 + $0x2f0] sm:$0xff]
    %v262 = vld [vmem:[#allocation2 + $0x2f8] sm:$0xff]
    %v263 = vld [vmem:[#allocation2 + $0x300] sm:$0xff]
    %v264 = vld [vmem:[#allocation2 + $0x308] sm:$0xff]
    %v265 = vld [vmem:[#allocation2 + $0x310] sm:$0xff]
    %v266 = vld [vmem:[#allocation2 + $0x318] sm:$0xff]
    %v267 = vld [vmem:[#allocation2 + $0x320] sm:$0xff]
    %v268 = vld [vmem:[#allocation2 + $0x328] sm:$0xff]
    %v269 = vld [vmem:[#allocation2 + $0x330] sm:$0xff]
    %v270 = vld [vmem:[#allocation2 + $0x338] sm:$0xff]
    %v271 = vld [vmem:[#allocation2 + $0x340] sm:$0xff]
    %v272 = vld [vmem:[#allocation2 + $0x348] sm:$0xff]
    %v273 = vld [vmem:[#allocation2 + $0x350] sm:$0xff]
    %v274 = vld [vmem:[#allocation2 + $0x358] sm:$0xff]
    %v275 = vld [vmem:[#allocation2 + $0x360] sm:$0xff]
    %v276 = vld [vmem:[#allocation2 + $0x368] sm:$0xff]
    %v277 = vld [vmem:[#allocation2 + $0x370] sm:$0xff]
    %v278 = vld [vmem:[#allocation2 + $0x378] sm:$0xff]
    %v279 = vld [vmem:[#allocation2 + $0x380] sm:$0xff]
    %v280 = vld [vmem:[#allocation2 + $0x388] sm:$0xff]
    %v281 = vld [vmem:[#allocation2 + $0x390] sm:$0xff]
    %v282 = vld [vmem:[#allocation2 + $0x398] sm:$0xff]
    %v283 = vld [vmem:[#allocation2 + $0x3a0] sm:$0xff]
    %v284 = vld [vmem:[#allocation2 + $0x3a8] sm:$0xff]
    %v285 = vld [vmem:[#allocation2 + $0x3b0] sm:$0xff]
    %v286 = vld [vmem:[#allocation2 + $0x3b8] sm:$0xff]
    %v287 = vld [vmem:[#allocation2 + $0x3c0] sm:$0xff]
    %v288 = vld [vmem:[#allocation2 + $0x3c8] sm:$0xff]
    %v289 = vld [vmem:[#allocation2 + $0x3d0] sm:$0xff]
    %v290 = vld [vmem:[#allocation2 + $0x3d8] sm:$0xff]
    %v291 = vld [vmem:[#allocation2 + $0x3e0] sm:$0xff]
    %v292 = vld [vmem:[#allocation2 + $0x3e8] sm:$0xff]
    %v293 = vld [vmem:[#allocation2 + $0x3f0] sm:$0xff]
    %v294 = vld [vmem:[#allocation2 + $0x3f8] sm:$0xff]
    %v295 = vld [vmem:[%s4] sm:$0xf]
    %v297 = vperm.slane %v295, 0
    %v298 = vperm.slane %v295, 1
    %v299 = vperm.slane %v295, 2
    %v300 = vperm.slane %v295, 3
    %v433 = vunpack.c.l.b16 %v167
    %v434 = vunpack.c.h.b16 %v167
    %v435 = vunpack.c.l.b16 %v168
    %v436 = vunpack.c.h.b16 %v168
    %v437 = vunpack.c.l.b16 %v169
    %v438 = vunpack.c.h.b16 %v169
    %v439 = vunpack.c.l.b16 %v170
    %v440 = vunpack.c.h.b16 %v170
    %v441 = vunpack.c.l.b16 %v171
    %v442 = vunpack.c.h.b16 %v171
    %v443 = vunpack.c.l.b16 %v172
    %v444 = vunpack.c.h.b16 %v172
    %v445 = vunpack.c.l.b16 %v173
    %v446 = vunpack.c.h.b16 %v173
    %v447 = vunpack.c.l.b16 %v174
    %v448 = vunpack.c.h.b16 %v174
    %v449 = vunpack.c.l.b16 %v175
    %v450 = vunpack.c.h.b16 %v175
    %v451 = vunpack.c.l.b16 %v176
    %v452 = vunpack.c.h.b16 %v176
    %v453 = vunpack.c.l.b16 %v177
    %v454 = vunpack.c.h.b16 %v177
    %v455 = vunpack.c.l.b16 %v178
    %v456 = vunpack.c.h.b16 %v178
    %v457 = vunpack.c.l.b16 %v179
    %v458 = vunpack.c.h.b16 %v179
    %v459 = vunpack.c.l.b16 %v180
    %v460 = vunpack.c.h.b16 %v180
    %v461 = vunpack.c.l.b16 %v181
    %v462 = vunpack.c.h.b16 %v181
    %v463 = vunpack.c.l.b16 %v182
    %v464 = vunpack.c.h.b16 %v182
    %v465 = vunpack.c.l.b16 %v183
    %v466 = vunpack.c.h.b16 %v183
    %v467 = vunpack.c.l.b16 %v184
    %v468 = vunpack.c.h.b16 %v184
    %v469 = vunpack.c.l.b16 %v185
    %v470 = vunpack.c.h.b16 %v185
    %v471 = vunpack.c.l.b16 %v186
    %v472 = vunpack.c.h.b16 %v186
    %v473 = vunpack.c.l.b16 %v187
    %v474 = vunpack.c.h.b16 %v187
    %v475 = vunpack.c.l.b16 %v188
    %v476 = vunpack.c.h.b16 %v188
    %v477 = vunpack.c.l.b16 %v189
    %v478 = vunpack.c.h.b16 %v189
    %v479 = vunpack.c.l.b16 %v190
    %v480 = vunpack.c.h.b16 %v190
    %v481 = vunpack.c.l.b16 %v191
    %v482 = vunpack.c.h.b16 %v191
    %v483 = vunpack.c.l.b16 %v192
    %v484 = vunpack.c.h.b16 %v192
    %v485 = vunpack.c.l.b16 %v193
    %v486 = vunpack.c.h.b16 %v193
    %v487 = vunpack.c.l.b16 %v194
    %v488 = vunpack.c.h.b16 %v194
    %v489 = vunpack.c.l.b16 %v195
    %v490 = vunpack.c.h.b16 %v195
    %v491 = vunpack.c.l.b16 %v196
    %v492 = vunpack.c.h.b16 %v196
    %v493 = vunpack.c.l.b16 %v197
    %v494 = vunpack.c.h.b16 %v197
    %v495 = vunpack.c.l.b16 %v198
    %v496 = vunpack.c.h.b16 %v198
    %v497 = vunpack.c.l.b16 %v199
    %v498 = vunpack.c.h.b16 %v199
    %v499 = vunpack.c.l.b16 %v200
    %v500 = vunpack.c.h.b16 %v200
    %v501 = vunpack.c.l.b16 %v201
    %v502 = vunpack.c.h.b16 %v201
    %v503 = vunpack.c.l.b16 %v202
    %v504 = vunpack.c.h.b16 %v202
    %v505 = vunpack.c.l.b16 %v203
    %v506 = vunpack.c.h.b16 %v203
    %v507 = vunpack.c.l.b16 %v204
    %v508 = vunpack.c.h.b16 %v204
    %v509 = vunpack.c.l.b16 %v205
    %v510 = vunpack.c.h.b16 %v205
    %v511 = vunpack.c.l.b16 %v206
    %v512 = vunpack.c.h.b16 %v206
    %v513 = vunpack.c.l.b16 %v207
    %v514 = vunpack.c.h.b16 %v207
    %v515 = vunpack.c.l.b16 %v208
    %v516 = vunpack.c.h.b16 %v208
    %v517 = vunpack.c.l.b16 %v209
    %v518 = vunpack.c.h.b16 %v209
    %v519 = vunpack.c.l.b16 %v210
    %v520 = vunpack.c.h.b16 %v210
    %v521 = vunpack.c.l.b16 %v211
    %v522 = vunpack.c.h.b16 %v211
    %v523 = vunpack.c.l.b16 %v212
    %v524 = vunpack.c.h.b16 %v212
    %v525 = vunpack.c.l.b16 %v213
    %v526 = vunpack.c.h.b16 %v213
    %v527 = vunpack.c.l.b16 %v214
    %v528 = vunpack.c.h.b16 %v214
    %v529 = vunpack.c.l.b16 %v215
    %v530 = vunpack.c.h.b16 %v215
    %v531 = vunpack.c.l.b16 %v216
    %v532 = vunpack.c.h.b16 %v216
    %v533 = vunpack.c.l.b16 %v217
    %v534 = vunpack.c.h.b16 %v217
    %v535 = vunpack.c.l.b16 %v218
    %v536 = vunpack.c.h.b16 %v218
    %v537 = vunpack.c.l.b16 %v219
    %v538 = vunpack.c.h.b16 %v219
    %v539 = vunpack.c.l.b16 %v220
    %v540 = vunpack.c.h.b16 %v220
    %v541 = vunpack.c.l.b16 %v221
    %v542 = vunpack.c.h.b16 %v221
    %v543 = vunpack.c.l.b16 %v222
    %v544 = vunpack.c.h.b16 %v222
    %v545 = vunpack.c.l.b16 %v223
    %v546 = vunpack.c.h.b16 %v223
    %v547 = vunpack.c.l.b16 %v224
    %v548 = vunpack.c.h.b16 %v224
    %v549 = vunpack.c.l.b16 %v225
    %v550 = vunpack.c.h.b16 %v225
    %v551 = vunpack.c.l.b16 %v226
    %v552 = vunpack.c.h.b16 %v226
    %v553 = vunpack.c.l.b16 %v227
    %v554 = vunpack.c.h.b16 %v227
    %v555 = vunpack.c.l.b16 %v228
    %v556 = vunpack.c.h.b16 %v228
    %v557 = vunpack.c.l.b16 %v229
    %v558 = vunpack.c.h.b16 %v229
    %v559 = vunpack.c.l.b16 %v230
    %v560 = vunpack.c.h.b16 %v230
    %v561 = vunpack.c.l.b16 %v231
    %v562 = vunpack.c.h.b16 %v231
    %v563 = vunpack.c.l.b16 %v232
    %v564 = vunpack.c.h.b16 %v232
    %v565 = vunpack.c.l.b16 %v233
    %v566 = vunpack.c.h.b16 %v233
    %v567 = vunpack.c.l.b16 %v234
    %v568 = vunpack.c.h.b16 %v234
    %v569 = vunpack.c.l.b16 %v235
    %v570 = vunpack.c.h.b16 %v235
    %v571 = vunpack.c.l.b16 %v236
    %v572 = vunpack.c.h.b16 %v236
    %v573 = vunpack.c.l.b16 %v237
    %v574 = vunpack.c.h.b16 %v237
    %v575 = vunpack.c.l.b16 %v238
    %v576 = vunpack.c.h.b16 %v238
    %v577 = vunpack.c.l.b16 %v239
    %v578 = vunpack.c.h.b16 %v239
    %v579 = vunpack.c.l.b16 %v240
    %v580 = vunpack.c.h.b16 %v240
    %v581 = vunpack.c.l.b16 %v241
    %v582 = vunpack.c.h.b16 %v241
    %v583 = vunpack.c.l.b16 %v242
    %v584 = vunpack.c.h.b16 %v242
    %v585 = vunpack.c.l.b16 %v243
    %v586 = vunpack.c.h.b16 %v243
    %v587 = vunpack.c.l.b16 %v244
    %v588 = vunpack.c.h.b16 %v244
    %v589 = vunpack.c.l.b16 %v245
    %v590 = vunpack.c.h.b16 %v245
    %v591 = vunpack.c.l.b16 %v246
    %v592 = vunpack.c.h.b16 %v246
    %v593 = vunpack.c.l.b16 %v247
    %v594 = vunpack.c.h.b16 %v247
    %v595 = vunpack.c.l.b16 %v248
    %v596 = vunpack.c.h.b16 %v248
    %v597 = vunpack.c.l.b16 %v249
    %v598 = vunpack.c.h.b16 %v249
    %v599 = vunpack.c.l.b16 %v250
    %v600 = vunpack.c.h.b16 %v250
    %v601 = vunpack.c.l.b16 %v251
    %v602 = vunpack.c.h.b16 %v251
    %v603 = vunpack.c.l.b16 %v252
    %v604 = vunpack.c.h.b16 %v252
    %v605 = vunpack.c.l.b16 %v253
    %v606 = vunpack.c.h.b16 %v253
    %v607 = vunpack.c.l.b16 %v254
    %v608 = vunpack.c.h.b16 %v254
    %v609 = vunpack.c.l.b16 %v255
    %v610 = vunpack.c.h.b16 %v255
    %v611 = vunpack.c.l.b16 %v256
    %v612 = vunpack.c.h.b16 %v256
    %v613 = vunpack.c.l.b16 %v257
    %v614 = vunpack.c.h.b16 %v257
    %v615 = vunpack.c.l.b16 %v258
    %v616 = vunpack.c.h.b16 %v258
    %v617 = vunpack.c.l.b16 %v259
    %v618 = vunpack.c.h.b16 %v259
    %v619 = vunpack.c.l.b16 %v260
    %v620 = vunpack.c.h.b16 %v260
    %v621 = vunpack.c.l.b16 %v261
    %v622 = vunpack.c.h.b16 %v261
    %v623 = vunpack.c.l.b16 %v262
    %v624 = vunpack.c.h.b16 %v262
    %v625 = vunpack.c.l.b16 %v263
    %v626 = vunpack.c.h.b16 %v263
    %v627 = vunpack.c.l.b16 %v264
    %v628 = vunpack.c.h.b16 %v264
    %v629 = vunpack.c.l.b16 %v265
    %v630 = vunpack.c.h.b16 %v265
    %v631 = vunpack.c.l.b16 %v266
    %v632 = vunpack.c.h.b16 %v266
    %v633 = vunpack.c.l.b16 %v267
    %v634 = vunpack.c.h.b16 %v267
    %v635 = vunpack.c.l.b16 %v268
    %v636 = vunpack.c.h.b16 %v268
    %v637 = vunpack.c.l.b16 %v269
    %v638 = vunpack.c.h.b16 %v269
    %v639 = vunpack.c.l.b16 %v270
    %v640 = vunpack.c.h.b16 %v270
    %v641 = vunpack.c.l.b16 %v271
    %v642 = vunpack.c.h.b16 %v271
    %v643 = vunpack.c.l.b16 %v272
    %v644 = vunpack.c.h.b16 %v272
    %v645 = vunpack.c.l.b16 %v273
    %v646 = vunpack.c.h.b16 %v273
    %v647 = vunpack.c.l.b16 %v274
    %v648 = vunpack.c.h.b16 %v274
    %v649 = vunpack.c.l.b16 %v275
    %v650 = vunpack.c.h.b16 %v275
    %v651 = vunpack.c.l.b16 %v276
    %v652 = vunpack.c.h.b16 %v276
    %v653 = vunpack.c.l.b16 %v277
    %v654 = vunpack.c.h.b16 %v277
    %v655 = vunpack.c.l.b16 %v278
    %v656 = vunpack.c.h.b16 %v278
    %v657 = vunpack.c.l.b16 %v279
    %v658 = vunpack.c.h.b16 %v279
    %v659 = vunpack.c.l.b16 %v280
    %v660 = vunpack.c.h.b16 %v280
    %v661 = vunpack.c.l.b16 %v281
    %v662 = vunpack.c.h.b16 %v281
    %v663 = vunpack.c.l.b16 %v282
    %v664 = vunpack.c.h.b16 %v282
    %v665 = vunpack.c.l.b16 %v283
    %v666 = vunpack.c.h.b16 %v283
    %v667 = vunpack.c.l.b16 %v284
    %v668 = vunpack.c.h.b16 %v284
    %v669 = vunpack.c.l.b16 %v285
    %v670 = vunpack.c.h.b16 %v285
    %v671 = vunpack.c.l.b16 %v286
    %v672 = vunpack.c.h.b16 %v286
    %v673 = vunpack.c.l.b16 %v287
    %v674 = vunpack.c.h.b16 %v287
    %v675 = vunpack.c.l.b16 %v288
    %v676 = vunpack.c.h.b16 %v288
    %v677 = vunpack.c.l.b16 %v289
    %v678 = vunpack.c.h.b16 %v289
    %v679 = vunpack.c.l.b16 %v290
    %v680 = vunpack.c.h.b16 %v290
    %v681 = vunpack.c.l.b16 %v291
    %v682 = vunpack.c.h.b16 %v291
    %v683 = vunpack.c.l.b16 %v292
    %v684 = vunpack.c.h.b16 %v292
    %v685 = vunpack.c.l.b16 %v293
    %v686 = vunpack.c.h.b16 %v293
    %v687 = vunpack.c.l.b16 %v294
    %v688 = vunpack.c.h.b16 %v294
    %v689 = vpack.c.b16 %v437, %v433
    %v690 = vpack.c.b16 %v438, %v434
    %v691 = vpack.c.b16 %v439, %v435
    %v692 = vpack.c.b16 %v440, %v436
    %v693 = vpack.c.b16 %v445, %v441
    %v694 = vpack.c.b16 %v446, %v442
    %v695 = vpack.c.b16 %v447, %v443
    %v696 = vpack.c.b16 %v448, %v444
    %v697 = vpack.c.b16 %v453, %v449
    %v698 = vpack.c.b16 %v454, %v450
    %v699 = vpack.c.b16 %v455, %v451
    %v700 = vpack.c.b16 %v456, %v452
    %v701 = vpack.c.b16 %v461, %v457
    %v702 = vpack.c.b16 %v462, %v458
    %v703 = vpack.c.b16 %v463, %v459
    %v704 = vpack.c.b16 %v464, %v460
    %v705 = vpack.c.b16 %v469, %v465
    %v706 = vpack.c.b16 %v470, %v466
    %v707 = vpack.c.b16 %v471, %v467
    %v708 = vpack.c.b16 %v472, %v468
    %v709 = vpack.c.b16 %v477, %v473
    %v710 = vpack.c.b16 %v478, %v474
    %v711 = vpack.c.b16 %v479, %v475
    %v712 = vpack.c.b16 %v480, %v476
    %v713 = vpack.c.b16 %v485, %v481
    %v714 = vpack.c.b16 %v486, %v482
    %v715 = vpack.c.b16 %v487, %v483
    %v716 = vpack.c.b16 %v488, %v484
    %v717 = vpack.c.b16 %v493, %v489
    %v718 = vpack.c.b16 %v494, %v490
    %v719 = vpack.c.b16 %v495, %v491
    %v720 = vpack.c.b16 %v496, %v492
    %v721 = vpack.c.b16 %v501, %v497
    %v722 = vpack.c.b16 %v502, %v498
    %v723 = vpack.c.b16 %v503, %v499
    %v724 = vpack.c.b16 %v504, %v500
    %v725 = vpack.c.b16 %v509, %v505
    %v726 = vpack.c.b16 %v510, %v506
    %v727 = vpack.c.b16 %v511, %v507
    %v728 = vpack.c.b16 %v512, %v508
    %v729 = vpack.c.b16 %v517, %v513
    %v730 = vpack.c.b16 %v518, %v514
    %v731 = vpack.c.b16 %v519, %v515
    %v732 = vpack.c.b16 %v520, %v516
    %v733 = vpack.c.b16 %v525, %v521
    %v734 = vpack.c.b16 %v526, %v522
    %v735 = vpack.c.b16 %v527, %v523
    %v736 = vpack.c.b16 %v528, %v524
    %v737 = vpack.c.b16 %v533, %v529
    %v738 = vpack.c.b16 %v534, %v530
    %v739 = vpack.c.b16 %v535, %v531
    %v740 = vpack.c.b16 %v536, %v532
    %v741 = vpack.c.b16 %v541, %v537
    %v742 = vpack.c.b16 %v542, %v538
    %v743 = vpack.c.b16 %v543, %v539
    %v744 = vpack.c.b16 %v544, %v540
    %v745 = vpack.c.b16 %v549, %v545
    %v746 = vpack.c.b16 %v550, %v546
    %v747 = vpack.c.b16 %v551, %v547
    %v748 = vpack.c.b16 %v552, %v548
    %v749 = vpack.c.b16 %v557, %v553
    %v750 = vpack.c.b16 %v558, %v554
    %v751 = vpack.c.b16 %v559, %v555
    %v752 = vpack.c.b16 %v560, %v556
    %v753 = vpack.c.b16 %v565, %v561
    %v754 = vpack.c.b16 %v566, %v562
    %v755 = vpack.c.b16 %v567, %v563
    %v756 = vpack.c.b16 %v568, %v564
    %v757 = vpack.c.b16 %v573, %v569
    %v758 = vpack.c.b16 %v574, %v570
    %v759 = vpack.c.b16 %v575, %v571
    %v760 = vpack.c.b16 %v576, %v572
    %v761 = vpack.c.b16 %v581, %v577
    %v762 = vpack.c.b16 %v582, %v578
    %v763 = vpack.c.b16 %v583, %v579
    %v764 = vpack.c.b16 %v584, %v580
    %v765 = vpack.c.b16 %v589, %v585
    %v766 = vpack.c.b16 %v590, %v586
    %v767 = vpack.c.b16 %v591, %v587
    %v768 = vpack.c.b16 %v592, %v588
    %v769 = vpack.c.b16 %v597, %v593
    %v770 = vpack.c.b16 %v598, %v594
    %v771 = vpack.c.b16 %v599, %v595
    %v772 = vpack.c.b16 %v600, %v596
    %v773 = vpack.c.b16 %v605, %v601
    %v774 = vpack.c.b16 %v606, %v602
    %v775 = vpack.c.b16 %v607, %v603
    %v776 = vpack.c.b16 %v608, %v604
    %v777 = vpack.c.b16 %v613, %v609
    %v778 = vpack.c.b16 %v614, %v610
    %v779 = vpack.c.b16 %v615, %v611
    %v780 = vpack.c.b16 %v616, %v612
    %v781 = vpack.c.b16 %v621, %v617
    %v782 = vpack.c.b16 %v622, %v618
    %v783 = vpack.c.b16 %v623, %v619
    %v784 = vpack.c.b16 %v624, %v620
    %v785 = vpack.c.b16 %v629, %v625
    %v786 = vpack.c.b16 %v630, %v626
    %v787 = vpack.c.b16 %v631, %v627
    %v788 = vpack.c.b16 %v632, %v628
    %v789 = vpack.c.b16 %v637, %v633
    %v790 = vpack.c.b16 %v638, %v634
    %v791 = vpack.c.b16 %v639, %v635
    %v792 = vpack.c.b16 %v640, %v636
    %v793 = vpack.c.b16 %v645, %v641
    %v794 = vpack.c.b16 %v646, %v642
    %v795 = vpack.c.b16 %v647, %v643
    %v796 = vpack.c.b16 %v648, %v644
    %v797 = vpack.c.b16 %v653, %v649
    %v798 = vpack.c.b16 %v654, %v650
    %v799 = vpack.c.b16 %v655, %v651
    %v800 = vpack.c.b16 %v656, %v652
    %v801 = vpack.c.b16 %v661, %v657
    %v802 = vpack.c.b16 %v662, %v658
    %v803 = vpack.c.b16 %v663, %v659
    %v804 = vpack.c.b16 %v664, %v660
    %v805 = vpack.c.b16 %v669, %v665
    %v806 = vpack.c.b16 %v670, %v666
    %v807 = vpack.c.b16 %v671, %v667
    %v808 = vpack.c.b16 %v672, %v668
    %v809 = vpack.c.b16 %v677, %v673
    %v810 = vpack.c.b16 %v678, %v674
    %v811 = vpack.c.b16 %v679, %v675
    %v812 = vpack.c.b16 %v680, %v676
    %v813 = vpack.c.b16 %v685, %v681
    %v814 = vpack.c.b16 %v686, %v682
    %v815 = vpack.c.b16 %v687, %v683
    %v816 = vpack.c.b16 %v688, %v684
    %945 = vmatpush.bf16.msra.mxu0 %v717
    %946 = vmatpush.bf16.msra.mxu0 %v713
    %947 = vmatpush.bf16.msra.mxu0 %v709
    %948 = vmatpush.bf16.msra.mxu0 %v705
    %949 = vmatpush.bf16.msra.mxu0 %v701
    %950 = vmatpush.bf16.msra.mxu0 %v697
    %951 = vmatpush.bf16.msra.mxu0 %v693
    %952 = vmatpush.bf16.msra.mxu0 %v689
    %953 = vmatmul.bf16.gmra.mxu0 %v163
    %v954 = vpop.f32.mrf.mxu0
    %v955 = vadd.f32 %v297, %v954
    %v956 = vpop.f32.mrf.mxu0
    %957 = vdwg.mxu0
    %958 = vmatpush.bf16.msra.mxu0 %v749
    %959 = vmatpush.bf16.msra.mxu0 %v745
    %960 = vmatpush.bf16.msra.mxu0 %v741
    %961 = vmatpush.bf16.msra.mxu0 %v737
    %962 = vmatpush.bf16.msra.mxu0 %v733
    %963 = vmatpush.bf16.msra.mxu0 %v729
    %964 = vmatpush.bf16.msra.mxu0 %v725
    %965 = vmatpush.bf16.msra.mxu0 %v721
    %966 = vmatmul.bf16.gmra.mxu0 %v164
    %v967 = vpop.f32.mrf.mxu0
    %v968 = vadd.f32 %v955, %v967
    %v969 = vpop.f32.mrf.mxu0
    %970 = vdwg.mxu0
    %971 = vmatpush.bf16.msra.mxu0 %v781
    %972 = vmatpush.bf16.msra.mxu0 %v777
    %973 = vmatpush.bf16.msra.mxu0 %v773
    %974 = vmatpush.bf16.msra.mxu0 %v769
    %975 = vmatpush.bf16.msra.mxu0 %v765
    %976 = vmatpush.bf16.msra.mxu0 %v761
    %977 = vmatpush.bf16.msra.mxu0 %v757
    %978 = vmatpush.bf16.msra.mxu0 %v753
    %979 = vmatmul.bf16.gmra.mxu0 %v165
    %v980 = vpop.f32.mrf.mxu0
    %v981 = vadd.f32 %v968, %v980
    %v982 = vpop.f32.mrf.mxu0
    %983 = vdwg.mxu0
    %984 = vmatpush.bf16.msra.mxu0 %v813
    %985 = vmatpush.bf16.msra.mxu0 %v809
    %986 = vmatpush.bf16.msra.mxu0 %v805
    %987 = vmatpush.bf16.msra.mxu0 %v801
    %988 = vmatpush.bf16.msra.mxu0 %v797
    %989 = vmatpush.bf16.msra.mxu0 %v793
    %990 = vmatpush.bf16.msra.mxu0 %v789
    %991 = vmatpush.bf16.msra.mxu0 %v785
    %992 = vmatmul.bf16.gmra.mxu0 %v166
    %v993 = vpop.f32.mrf.mxu0
    %v994 = vadd.f32 %v981, %v993
    %v995 = vpop.f32.mrf.mxu0
    %996 = vdwg.mxu0
    %997 = vmatpush.bf16.msra.mxu0 %v718
    %998 = vmatpush.bf16.msra.mxu0 %v714
    %999 = vmatpush.bf16.msra.mxu0 %v710
    %1000 = vmatpush.bf16.msra.mxu0 %v706
    %1001 = vmatpush.bf16.msra.mxu0 %v702
    %1002 = vmatpush.bf16.msra.mxu0 %v698
    %1003 = vmatpush.bf16.msra.mxu0 %v694
    %1004 = vmatpush.bf16.msra.mxu0 %v690
    %1005 = vmatmul.bf16.gmra.mxu0 %v163
    %v1006 = vpop.f32.mrf.mxu0
    %v1007 = vadd.f32 %v298, %v1006
    %v1008 = vpop.f32.mrf.mxu0
    %1009 = vdwg.mxu0
    %1010 = vmatpush.bf16.msra.mxu0 %v750
    %1011 = vmatpush.bf16.msra.mxu0 %v746
    %1012 = vmatpush.bf16.msra.mxu0 %v742
    %1013 = vmatpush.bf16.msra.mxu0 %v738
    %1014 = vmatpush.bf16.msra.mxu0 %v734
    %1015 = vmatpush.bf16.msra.mxu0 %v730
    %1016 = vmatpush.bf16.msra.mxu0 %v726
    %1017 = vmatpush.bf16.msra.mxu0 %v722
    %1018 = vmatmul.bf16.gmra.mxu0 %v164
    %v1019 = vpop.f32.mrf.mxu0
    %v1020 = vadd.f32 %v1007, %v1019
    %v1021 = vpop.f32.mrf.mxu0
    %1022 = vdwg.mxu0
    %1023 = vmatpush.bf16.msra.mxu0 %v782
    %1024 = vmatpush.bf16.msra.mxu0 %v778
    %1025 = vmatpush.bf16.msra.mxu0 %v774
    %1026 = vmatpush.bf16.msra.mxu0 %v770
    %1027 = vmatpush.bf16.msra.mxu0 %v766
    %1028 = vmatpush.bf16.msra.mxu0 %v762
    %1029 = vmatpush.bf16.msra.mxu0 %v758
    %1030 = vmatpush.bf16.msra.mxu0 %v754
    %1031 = vmatmul.bf16.gmra.mxu0 %v165
    %v1032 = vpop.f32.mrf.mxu0
    %v1033 = vadd.f32 %v1020, %v1032
    %v1034 = vpop.f32.mrf.mxu0
    %1035 = vdwg.mxu0
    %1036 = vmatpush.bf16.msra.mxu0 %v814
    %1037 = vmatpush.bf16.msra.mxu0 %v810
    %1038 = vmatpush.bf16.msra.mxu0 %v806
    %1039 = vmatpush.bf16.msra.mxu0 %v802
    %1040 = vmatpush.bf16.msra.mxu0 %v798
    %1041 = vmatpush.bf16.msra.mxu0 %v794
    %1042 = vmatpush.bf16.msra.mxu0 %v790
    %1043 = vmatpush.bf16.msra.mxu0 %v786
    %1044 = vmatmul.bf16.gmra.mxu0 %v166
    %v1045 = vpop.f32.mrf.mxu0
    %v1046 = vadd.f32 %v1033, %v1045
    %v1047 = vpop.f32.mrf.mxu0
    %1048 = vdwg.mxu0
    %1049 = vmatpush.bf16.msra.mxu0 %v719
    %1050 = vmatpush.bf16.msra.mxu0 %v715
    %1051 = vmatpush.bf16.msra.mxu0 %v711
    %1052 = vmatpush.bf16.msra.mxu0 %v707
    %1053 = vmatpush.bf16.msra.mxu0 %v703
    %1054 = vmatpush.bf16.msra.mxu0 %v699
    %1055 = vmatpush.bf16.msra.mxu0 %v695
    %1056 = vmatpush.bf16.msra.mxu0 %v691
    %1057 = vmatmul.bf16.gmra.mxu0 %v163
    %v1058 = vpop.f32.mrf.mxu0
    %v1059 = vadd.f32 %v299, %v1058
    %v1060 = vpop.f32.mrf.mxu0
    %1061 = vdwg.mxu0
    %1062 = vmatpush.bf16.msra.mxu0 %v751
    %1063 = vmatpush.bf16.msra.mxu0 %v747
    %1064 = vmatpush.bf16.msra.mxu0 %v743
    %1065 = vmatpush.bf16.msra.mxu0 %v739
    %1066 = vmatpush.bf16.msra.mxu0 %v735
    %1067 = vmatpush.bf16.msra.mxu0 %v731
    %1068 = vmatpush.bf16.msra.mxu0 %v727
    %1069 = vmatpush.bf16.msra.mxu0 %v723
    %1070 = vmatmul.bf16.gmra.mxu0 %v164
    %v1071 = vpop.f32.mrf.mxu0
    %v1072 = vadd.f32 %v1059, %v1071
    %v1073 = vpop.f32.mrf.mxu0
    %1074 = vdwg.mxu0
    %1075 = vmatpush.bf16.msra.mxu0 %v783
    %1076 = vmatpush.bf16.msra.mxu0 %v779
    %1077 = vmatpush.bf16.msra.mxu0 %v775
    %1078 = vmatpush.bf16.msra.mxu0 %v771
    %1079 = vmatpush.bf16.msra.mxu0 %v767
    %1080 = vmatpush.bf16.msra.mxu0 %v763
    %1081 = vmatpush.bf16.msra.mxu0 %v759
    %1082 = vmatpush.bf16.msra.mxu0 %v755
    %1083 = vmatmul.bf16.gmra.mxu0 %v165
    %v1084 = vpop.f32.mrf.mxu0
    %v1085 = vadd.f32 %v1072, %v1084
    %v1086 = vpop.f32.mrf.mxu0
    %1087 = vdwg.mxu0
    %1088 = vmatpush.bf16.msra.mxu0 %v815
    %1089 = vmatpush.bf16.msra.mxu0 %v811
    %1090 = vmatpush.bf16.msra.mxu0 %v807
    %1091 = vmatpush.bf16.msra.mxu0 %v803
    %1092 = vmatpush.bf16.msra.mxu0 %v799
    %1093 = vmatpush.bf16.msra.mxu0 %v795
    %1094 = vmatpush.bf16.msra.mxu0 %v791
    %1095 = vmatpush.bf16.msra.mxu0 %v787
    %1096 = vmatmul.bf16.gmra.mxu0 %v166
    %v1097 = vpop.f32.mrf.mxu0
    %v1098 = vadd.f32 %v1085, %v1097
    %v1099 = vpop.f32.mrf.mxu0
    %1100 = vdwg.mxu0
    %1101 = vmatpush.bf16.msra.mxu0 %v720
    %1102 = vmatpush.bf16.msra.mxu0 %v716
    %1103 = vmatpush.bf16.msra.mxu0 %v712
    %1104 = vmatpush.bf16.msra.mxu0 %v708
    %1105 = vmatpush.bf16.msra.mxu0 %v704
    %1106 = vmatpush.bf16.msra.mxu0 %v700
    %1107 = vmatpush.bf16.msra.mxu0 %v696
    %1108 = vmatpush.bf16.msra.mxu0 %v692
    %1109 = vmatmul.bf16.gmra.mxu0 %v163
    %v1110 = vpop.f32.mrf.mxu0
    %v1111 = vadd.f32 %v300, %v1110
    %v1112 = vpop.f32.mrf.mxu0
    %1113 = vdwg.mxu0
    %1114 = vmatpush.bf16.msra.mxu0 %v752
    %1115 = vmatpush.bf16.msra.mxu0 %v748
    %1116 = vmatpush.bf16.msra.mxu0 %v744
    %1117 = vmatpush.bf16.msra.mxu0 %v740
    %1118 = vmatpush.bf16.msra.mxu0 %v736
    %1119 = vmatpush.bf16.msra.mxu0 %v732
    %1120 = vmatpush.bf16.msra.mxu0 %v728
    %1121 = vmatpush.bf16.msra.mxu0 %v724
    %1122 = vmatmul.bf16.gmra.mxu0 %v164
    %v1123 = vpop.f32.mrf.mxu0
    %v1124 = vadd.f32 %v1111, %v1123
    %v1125 = vpop.f32.mrf.mxu0
    %1126 = vdwg.mxu0
    %1127 = vmatpush.bf16.msra.mxu0 %v784
    %1128 = vmatpush.bf16.msra.mxu0 %v780
    %1129 = vmatpush.bf16.msra.mxu0 %v776
    %1130 = vmatpush.bf16.msra.mxu0 %v772
    %1131 = vmatpush.bf16.msra.mxu0 %v768
    %1132 = vmatpush.bf16.msra.mxu0 %v764
    %1133 = vmatpush.bf16.msra.mxu0 %v760
    %1134 = vmatpush.bf16.msra.mxu0 %v756
    %1135 = vmatmul.bf16.gmra.mxu0 %v165
    %v1136 = vpop.f32.mrf.mxu0
    %v1137 = vadd.f32 %v1124, %v1136
    %v1138 = vpop.f32.mrf.mxu0
    %1139 = vdwg.mxu0
    %1140 = vmatpush.bf16.msra.mxu0 %v816
    %1141 = vmatpush.bf16.msra.mxu0 %v812
    %1142 = vmatpush.bf16.msra.mxu0 %v808
    %1143 = vmatpush.bf16.msra.mxu0 %v804
    %1144 = vmatpush.bf16.msra.mxu0 %v800
    %1145 = vmatpush.bf16.msra.mxu0 %v796
    %1146 = vmatpush.bf16.msra.mxu0 %v792
    %1147 = vmatpush.bf16.msra.mxu0 %v788
    %1148 = vmatmul.bf16.gmra.mxu0 %v166
    %v1149 = vpop.f32.mrf.mxu0
    %v1150 = vadd.f32 %v1137, %v1149
    %v1151 = vpop.f32.mrf.mxu0
    %1152 = vdwg.mxu0
    %v1153 = vmax.f32 %v994, 0.0
    %v1154 = vmax.f32 %v1046, 0.0
    %v1155 = vmax.f32 %v1098, 0.0
    %v1156 = vmax.f32 %v1150, 0.0
    %v1157 = vld [vmem:[%s5] sm:$0xff]
    %v1158 = vld [vmem:[%s5 + $0x8] sm:$0xff]
    %v1159 = vld [vmem:[%s5 + $0x10] sm:$0xff]
    %v1160 = vld [vmem:[%s5 + $0x18] sm:$0xff]
    %v1161 = vld [vmem:[%s5 + $0x20] sm:$0xff]
    %v1162 = vld [vmem:[%s5 + $0x28] sm:$0xff]
    %v1163 = vld [vmem:[%s5 + $0x30] sm:$0xff]
    %v1164 = vld [vmem:[%s5 + $0x38] sm:$0xff]
    %v1165 = vld [vmem:[%s5 + $0x40] sm:$0xff]
    %v1166 = vld [vmem:[%s5 + $0x48] sm:$0xff]
    %v1167 = vld [vmem:[%s5 + $0x50] sm:$0xff]
    %v1168 = vld [vmem:[%s5 + $0x58] sm:$0xff]
    %v1169 = vld [vmem:[%s5 + $0x60] sm:$0xff]
    %v1170 = vld [vmem:[%s5 + $0x68] sm:$0xff]
    %v1171 = vld [vmem:[%s5 + $0x70] sm:$0xff]
    %v1172 = vld [vmem:[%s5 + $0x78] sm:$0xff]
    %v1173 = vld [vmem:[%s5 + $0x80] sm:$0xff]
    %v1174 = vld [vmem:[%s5 + $0x88] sm:$0xff]
    %v1175 = vld [vmem:[%s5 + $0x90] sm:$0xff]
    %v1176 = vld [vmem:[%s5 + $0x98] sm:$0xff]
    %v1177 = vld [vmem:[%s5 + $0xa0] sm:$0xff]
    %v1178 = vld [vmem:[%s5 + $0xa8] sm:$0xff]
    %v1179 = vld [vmem:[%s5 + $0xb0] sm:$0xff]
    %v1180 = vld [vmem:[%s5 + $0xb8] sm:$0xff]
    %v1181 = vld [vmem:[%s5 + $0xc0] sm:$0xff]
    %v1182 = vld [vmem:[%s5 + $0xc8] sm:$0xff]
    %v1183 = vld [vmem:[%s5 + $0xd0] sm:$0xff]
    %v1184 = vld [vmem:[%s5 + $0xd8] sm:$0xff]
    %v1185 = vld [vmem:[%s5 + $0xe0] sm:$0xff]
    %v1186 = vld [vmem:[%s5 + $0xe8] sm:$0xff]
    %v1187 = vld [vmem:[%s5 + $0xf0] sm:$0xff]
    %v1188 = vld [vmem:[%s5 + $0xf8] sm:$0xff]
    %v1189 = vld [vmem:[%s5 + $0x100] sm:$0xff]
    %v1190 = vld [vmem:[%s5 + $0x108] sm:$0xff]
    %v1191 = vld [vmem:[%s5 + $0x110] sm:$0xff]
    %v1192 = vld [vmem:[%s5 + $0x118] sm:$0xff]
    %v1193 = vld [vmem:[%s5 + $0x120] sm:$0xff]
    %v1194 = vld [vmem:[%s5 + $0x128] sm:$0xff]
    %v1195 = vld [vmem:[%s5 + $0x130] sm:$0xff]
    %v1196 = vld [vmem:[%s5 + $0x138] sm:$0xff]
    %v1197 = vld [vmem:[%s5 + $0x140] sm:$0xff]
    %v1198 = vld [vmem:[%s5 + $0x148] sm:$0xff]
    %v1199 = vld [vmem:[%s5 + $0x150] sm:$0xff]
    %v1200 = vld [vmem:[%s5 + $0x158] sm:$0xff]
    %v1201 = vld [vmem:[%s5 + $0x160] sm:$0xff]
    %v1202 = vld [vmem:[%s5 + $0x168] sm:$0xff]
    %v1203 = vld [vmem:[%s5 + $0x170] sm:$0xff]
    %v1204 = vld [vmem:[%s5 + $0x178] sm:$0xff]
    %v1205 = vld [vmem:[%s5 + $0x180] sm:$0xff]
    %v1206 = vld [vmem:[%s5 + $0x188] sm:$0xff]
    %v1207 = vld [vmem:[%s5 + $0x190] sm:$0xff]
    %v1208 = vld [vmem:[%s5 + $0x198] sm:$0xff]
    %v1209 = vld [vmem:[%s5 + $0x1a0] sm:$0xff]
    %v1210 = vld [vmem:[%s5 + $0x1a8] sm:$0xff]
    %v1211 = vld [vmem:[%s5 + $0x1b0] sm:$0xff]
    %v1212 = vld [vmem:[%s5 + $0x1b8] sm:$0xff]
    %v1213 = vld [vmem:[%s5 + $0x1c0] sm:$0xff]
    %v1214 = vld [vmem:[%s5 + $0x1c8] sm:$0xff]
    %v1215 = vld [vmem:[%s5 + $0x1d0] sm:$0xff]
    %v1216 = vld [vmem:[%s5 + $0x1d8] sm:$0xff]
    %v1217 = vld [vmem:[%s5 + $0x1e0] sm:$0xff]
    %v1218 = vld [vmem:[%s5 + $0x1e8] sm:$0xff]
    %v1219 = vld [vmem:[%s5 + $0x1f0] sm:$0xff]
    %v1220 = vld [vmem:[%s5 + $0x1f8] sm:$0xff]
    %v1221 = vld [vmem:[%s6] sm:$0x1]
    %v1223 = vperm.slane %v1221, 0
    %1225 = vmatpush.msra.mxu0 %v1172
    %1226 = vmatpush.msra.mxu0 %v1171
    %1227 = vmatpush.msra.mxu0 %v1170
    %1228 = vmatpush.msra.mxu0 %v1169
    %1229 = vmatpush.msra.mxu0 %v1168
    %1230 = vmatpush.msra.mxu0 %v1167
    %1231 = vmatpush.msra.mxu0 %v1166
    %1232 = vmatpush.msra.mxu0 %v1165
    %1233 = vmatpush.msra.mxu0 %v1164
    %1234 = vmatpush.msra.mxu0 %v1163
    %1235 = vmatpush.msra.mxu0 %v1162
    %1236 = vmatpush.msra.mxu0 %v1161
    %1237 = vmatpush.msra.mxu0 %v1160
    %1238 = vmatpush.msra.mxu0 %v1159
    %1239 = vmatpush.msra.mxu0 %v1158
    %1240 = vmatpush.msra.mxu0 %v1157
    %1241 = vmatmul.f32.gmra.mxu0 %v1153
    %v1242 = vpop.f32.mrf.mxu0
    %v1243 = vadd.f32 %v1223, %v1242
    %1244 = vdwg.mxu0
    %1245 = vmatpush.msra.mxu0 %v1188
    %1246 = vmatpush.msra.mxu0 %v1187
    %1247 = vmatpush.msra.mxu0 %v1186
    %1248 = vmatpush.msra.mxu0 %v1185
    %1249 = vmatpush.msra.mxu0 %v1184
    %1250 = vmatpush.msra.mxu0 %v1183
    %1251 = vmatpush.msra.mxu0 %v1182
    %1252 = vmatpush.msra.mxu0 %v1181
    %1253 = vmatpush.msra.mxu0 %v1180
    %1254 = vmatpush.msra.mxu0 %v1179
    %1255 = vmatpush.msra.mxu0 %v1178
    %1256 = vmatpush.msra.mxu0 %v1177
    %1257 = vmatpush.msra.mxu0 %v1176
    %1258 = vmatpush.msra.mxu0 %v1175
    %1259 = vmatpush.msra.mxu0 %v1174
    %1260 = vmatpush.msra.mxu0 %v1173
    %1261 = vmatmul.f32.gmra.mxu0 %v1154
    %v1262 = vpop.f32.mrf.mxu0
    %v1263 = vadd.f32 %v1243, %v1262
    %1264 = vdwg.mxu0
    %1265 = vmatpush.msra.mxu0 %v1204
    %1266 = vmatpush.msra.mxu0 %v1203
    %1267 = vmatpush.msra.mxu0 %v1202
    %1268 = vmatpush.msra.mxu0 %v1201
    %1269 = vmatpush.msra.mxu0 %v1200
    %1270 = vmatpush.msra.mxu0 %v1199
    %1271 = vmatpush.msra.mxu0 %v1198
    %1272 = vmatpush.msra.mxu0 %v1197
    %1273 = vmatpush.msra.mxu0 %v1196
    %1274 = vmatpush.msra.mxu0 %v1195
    %1275 = vmatpush.msra.mxu0 %v1194
    %1276 = vmatpush.msra.mxu0 %v1193
    %1277 = vmatpush.msra.mxu0 %v1192
    %1278 = vmatpush.msra.mxu0 %v1191
    %1279 = vmatpush.msra.mxu0 %v1190
    %1280 = vmatpush.msra.mxu0 %v1189
    %1281 = vmatmul.f32.gmra.mxu0 %v1155
    %v1282 = vpop.f32.mrf.mxu0
    %v1283 = vadd.f32 %v1263, %v1282
    %1284 = vdwg.mxu0
    %1285 = vmatpush.msra.mxu0 %v1220
    %1286 = vmatpush.msra.mxu0 %v1219
    %1287 = vmatpush.msra.mxu0 %v1218
    %1288 = vmatpush.msra.mxu0 %v1217
    %1289 = vmatpush.msra.mxu0 %v1216
    %1290 = vmatpush.msra.mxu0 %v1215
    %1291 = vmatpush.msra.mxu0 %v1214
    %1292 = vmatpush.msra.mxu0 %v1213
    %1293 = vmatpush.msra.mxu0 %v1212
    %1294 = vmatpush.msra.mxu0 %v1211
    %1295 = vmatpush.msra.mxu0 %v1210
    %1296 = vmatpush.msra.mxu0 %v1209
    %1297 = vmatpush.msra.mxu0 %v1208
    %1298 = vmatpush.msra.mxu0 %v1207
    %1299 = vmatpush.msra.mxu0 %v1206
    %1300 = vmatpush.msra.mxu0 %v1205
    %1301 = vmatmul.f32.gmra.mxu0 %v1156
    %v1302 = vpop.f32.mrf.mxu0
    %v1303 = vadd.f32 %v1283, %v1302
    %1304 = vdwg.mxu0
    %vm1305 = vcmask 64512
    %1306 = vst.msk [vmem:[#allocation5] sm:$0xff] %vm1305, %v1303
    // Predicated region
    $region34: #{tpu_custom_call.1} parent=1 // pred_check
      _
    $region35: #{tpu_custom_call.1} parent=1 // pred_check_branch
      %1308 = sbr.rel (0) target = $region37
    $region36: #{tpu_custom_call.1} parent=1 // pred_region
      %1310 = vsyncadd [#allocation4], 0
      %s1312 = sshll.u32 [#allocation5], 4
      %s1313 = int_to_ptr.vmem [resolvable:$true] %s1312
      %s1314 = sshll.u32 %s7, 4
      %s1315 = int_to_ptr.hbm [resolvable:$true] %s1314
      %1317 = dma.vmem_to_hbm [thread:$0]  %s1313, 128, %s1315, [#allocation4]
    $region37: #{tpu_custom_call.1} parent=1 // pred_fallthru
      _
    // Predicated region
    $region38: #{tpu_custom_call.1} parent=1 // pred_check
      _
    $region39: #{tpu_custom_call.1} parent=1 // pred_check_branch
      %1319 = sbr.rel (0) target = $region41
    $region40: #{tpu_custom_call.1} parent=1 // pred_region
      %1321 = dma.done [#allocation4], 128
    $region41: #{tpu_custom_call.1} parent=1 // pred_fallthru
      _
    %1322 = vsyncpa [#allocation3], 1
    %1323 = vsyncpa [#allocation4], 1

</llo_original>
